<compile_context>
chip_gen: v6e
topology: v6e:2x2x1
jax: 0.10.0
libtpu: 0.0.40
codegen_flags: <defaults>
</compile_context>

<pallas_src>
import functools

import jax
import jax.numpy as jnp
from jax.experimental import pallas as pl
from jax.experimental.pallas import tpu as pltpu


# --------------------------------------------------------------------------
# Kernels
# --------------------------------------------------------------------------
def _kernel_full_k(*refs, use_bias):
    """One (tm, tn) output tile, full K in a single MXU matmul. No reduction axis."""
    if use_bias:
        x_ref, wt_ref, b_ref, o_ref = refs
    else:
        x_ref, wt_ref, o_ref = refs
        b_ref = None
    out = jnp.dot(x_ref[...], wt_ref[...], preferred_element_type=jnp.float32)
    if use_bias:
        out = out + b_ref[...].astype(jnp.float32)  # (1, tn) broadcasts over rows
    o_ref[...] = out.astype(o_ref.dtype)


def _kernel_split_k(*refs, use_bias, acc_in_out):
    """One (tm, tn) output tile accumulated over the innermost K grid axis.

    If acc_in_out (f32 output), the accumulator IS the resident output block:
    no scratch, no final copy/cast.
    """
    idx = 0
    x_ref = refs[idx]; idx += 1
    wt_ref = refs[idx]; idx += 1
    b_ref = None
    if use_bias:
        b_ref = refs[idx]; idx += 1
    o_ref = refs[idx]; idx += 1
    acc_ref = o_ref if acc_in_out else refs[idx]

    k = pl.program_id(2)
    last_k = pl.num_programs(2) - 1

    partial = jnp.dot(x_ref[...], wt_ref[...], preferred_element_type=jnp.float32)

    @pl.when(k == 0)
    def _():
        acc_ref[...] = partial.astype(acc_ref.dtype)

    @pl.when(k > 0)
    def _():
        acc_ref[...] += partial.astype(acc_ref.dtype)

    if use_bias or not acc_in_out:
        @pl.when(k == last_k)
        def _():
            out = acc_ref[...].astype(jnp.float32)
            if use_bias:
                out = out + b_ref[...].astype(jnp.float32)
            o_ref[...] = out.astype(o_ref.dtype)


# --------------------------------------------------------------------------
# Tile selection (chip-aware)
# --------------------------------------------------------------------------
def _vmem_capacity_bytes():
    try:
        return int(pltpu.get_tpu_info().vmem_capacity_bytes)
    except Exception:
        return 64 * 1024 * 1024  # conservative (v7x per-TensorCore VMEM)


def _choose_tiles(M, K, N, in_itemsize, out_itemsize, use_bias, budget):
    """Return (tm, tk, tn, split_k). tk is None only in the rare pad fallback."""

    def fits(tm, tk, tn, split_k):
        b = 2 * (tm * tk + tk * tn) * in_itemsize            # double-buffered x, W^T tiles
        b += 2 * tm * tn * out_itemsize                       # output tile
        if use_bias:
            b += 2 * tn * in_itemsize
        if split_k and out_itemsize != 4:
            b += tm * tn * 4                                   # f32 accumulator scratch
        return b <= budget

    # Largest MXU-friendly tiles first; tm multiple of 8 (or == M), tn multiple
    # of 128 (or == N) so edge blocks stay legal.
    for tm_c, tn_c in ((512, 512), (512, 256), (256, 256), (256, 128),
                       (128, 128), (64, 128), (32, 128), (16, 128), (8, 128)):
        tm = M if M <= tm_c else tm_c
        tn = N if N <= tn_c else tn_c
        # 1) Whole K in one block -> no reduction axis at all.
        if fits(tm, K, tn, split_k=False):
            return tm, K, tn, False
        # 2) Multiple-of-128 tk that exactly divides K (no padding, no garbage).
        tk = (min(K, 2048) // 128) * 128
        while tk >= 128:
            if K % tk == 0 and fits(tm, tk, tn, split_k=True):
                return tm, tk, tn, True
            tk -= 128
    return (8 if M >= 8 else M), None, (128 if N >= 128 else N), True


# --------------------------------------------------------------------------
# Wrapper
# --------------------------------------------------------------------------
def linear_pallas(x, w_t, bias=None):
    """y = x @ w_t + bias   (== x @ W.T + b for a PyTorch nn.Linear weight W = w_t.T).

    x:    [..., K]   (any number of leading dims)
    w_t:  [K, N]     the PyTorch [N, K] weight transposed ONCE and cached by the caller
    bias: [N] or None
    """
    *lead, K = x.shape
    K_w, N = w_t.shape
    assert K_w == K, f"w_t inner dim {K_w} != x inner dim {K}"

    M = 1
    for d in lead:
        M *= d
    x2d = x.reshape(M, K)

    use_bias = bias is not None
    b2d = bias.reshape(1, N) if use_bias else None
    out_dtype = x.dtype

    in_itemsize = jnp.dtype(x.dtype).itemsize
    out_itemsize = jnp.dtype(out_dtype).itemsize

    vmem_cap = _vmem_capacity_bytes()
    budget = vmem_cap // 2                       # double-buffered tile working set
    tm, tk, tn, split_k = _choose_tiles(M, K, N, in_itemsize, out_itemsize,
                                        use_bias, budget)

    if tk is None:
        # TODO(synk): rare fallback (K has no VMEM-fitting multiple-of-128
        # divisor): pad K once so the reduction grid never reads OOB garbage.
        tk = 512
        kpad = pl.cdiv(K, tk) * tk - K
        x2d = jnp.pad(x2d, ((0, 0), (0, kpad)))
        w_t = jnp.pad(w_t, ((0, kpad), (0, 0)))
        K = K + kpad
        split_k = (K // tk) > 1
        if not split_k:
            tk = K

    grid_m, grid_n = pl.cdiv(M, tm), pl.cdiv(N, tn)

    # v7x has 2 TensorCores: make sure the "parallel" axes expose >= 2 blocks
    # for non-trivial problems so the kernel doesn't serialize onto one core.
    if grid_m * grid_n == 1 and (2 * M * N * K) > (1 << 27):
        if N >= 256:
            tn = max(128, (tn // 2 // 128) * 128)
        elif M >= 16:
            tm = max(8, (tm // 2 // 8) * 8)
        grid_m, grid_n = pl.cdiv(M, tm), pl.cdiv(N, tn)

    cost = pl.CostEstimate(
        flops=2 * M * N * K,
        transcendentals=0,
        bytes_accessed=(M * K + K * N + (N if use_bias else 0)) * in_itemsize
        + M * N * out_itemsize,
    )
    vmem_limit = min(int(vmem_cap * 0.85), 112 * 1024 * 1024)

    if not split_k:
        # ---- 2-D grid: one matmul per output tile, output written exactly once.
        in_specs = [
            pl.BlockSpec((tm, K), lambda i, j: (i, 0)),    # x tile (full K)
            pl.BlockSpec((K, tn), lambda i, j: (0, j)),    # W^T tile (full K)
        ]
        args = [x2d, w_t]
        if use_bias:
            in_specs.append(pl.BlockSpec((1, tn), lambda i, j: (0, j)))
            args.append(b2d)
        out2d = pl.pallas_call(
            functools.partial(_kernel_full_k, use_bias=use_bias),
            out_shape=jax.ShapeDtypeStruct((M, N), out_dtype),
            grid_spec=pltpu.PrefetchScalarGridSpec(
                num_scalar_prefetch=0,
                grid=(grid_m, grid_n),
                in_specs=in_specs,
                out_specs=pl.BlockSpec((tm, tn), lambda i, j: (i, j)),
                scratch_shapes=[],
            ),
            compiler_params=pltpu.CompilerParams(
                dimension_semantics=("parallel", "parallel"),
                vmem_limit_bytes=vmem_limit,
            ),
            cost_estimate=cost,
        )(*args)
    else:
        # ---- 3-D grid: K innermost "arbitrary" reduction axis; tk divides K.
        acc_in_out = jnp.dtype(out_dtype) == jnp.dtype(jnp.float32)
        in_specs = [
            pl.BlockSpec((tm, tk), lambda i, j, k: (i, k)),   # x tile
            pl.BlockSpec((tk, tn), lambda i, j, k: (k, j)),   # W^T tile
        ]
        args = [x2d, w_t]
        if use_bias:
            in_specs.append(pl.BlockSpec((1, tn), lambda i, j, k: (0, j)))
            args.append(b2d)
        scratch = [] if acc_in_out else [pltpu.VMEM((tm, tn), jnp.float32)]
        out2d = pl.pallas_call(
            functools.partial(_kernel_split_k, use_bias=use_bias,
                              acc_in_out=acc_in_out),
            out_shape=jax.ShapeDtypeStruct((M, N), out_dtype),
            grid_spec=pltpu.PrefetchScalarGridSpec(
                num_scalar_prefetch=0,
                grid=(grid_m, grid_n, K // tk),
                in_specs=in_specs,
                out_specs=pl.BlockSpec((tm, tn), lambda i, j, k: (i, j)),
                scratch_shapes=scratch,
            ),
            compiler_params=pltpu.CompilerParams(
                dimension_semantics=("parallel", "parallel", "arbitrary"),
                vmem_limit_bytes=vmem_limit,
            ),
            cost_estimate=cost,
        )(*args)

    return out2d.reshape(*lead, N)


class MLP:
    """Pallas analogue of the PyTorch MLP module (a single nn.Linear).

    Weight is stored pre-transposed ([K, N]) — a one-time cost, paid at
    construction (mirrors loading the state dict), never in the per-call path.
    """

    def __init__(self, weight, bias=None):
        self.w_t = jnp.asarray(weight).T            # [N, K] -> [K, N], cached
        self.bias = None if bias is None else jnp.asarray(bias)

    def __call__(self, x):
        return linear_pallas(x, self.w_t, self.bias)


# --------------------------------------------------------------------------
# Self-test
# --------------------------------------------------------------------------
if __name__ == "__main__":
    key = jax.random.PRNGKey(0)
    kx, kw, kb, kx2, kw2 = jax.random.split(key, 5)

    # --- Small config (input_size=256, output_size=128, mlp_bias=True).
    #     Exercises the full-K (no reduction axis) path with a (1,1) grid. ---
    batch, seq = 2, 8
    input_size, output_size = 256, 128

    x = jax.random.normal(kx, (batch, seq, input_size), dtype=jnp.float32)
    weight = jax.random.normal(kw, (output_size, input_size), dtype=jnp.float32) * 0.02
    bias = jax.random.normal(kb, (output_size,), dtype=jnp.float32) * 0.02

    mlp = MLP(weight, bias)
    y = jax.block_until_ready(mlp(x))
    y_ref = x @ weight.T + bias
    assert y.shape == (batch, seq, output_size)
    assert jnp.allclose(y, y_ref, atol=1e-4, rtol=1e-4)

    # --- Larger no-bias config (K=1536): exercises the tiled path, the
    #     no-padding K handling and the >=2-parallel-blocks split. ---
    M2, K2, N2 = 512, 1536, 512
    x2 = jax.random.normal(kx2, (M2, K2), dtype=jnp.float32)
    w2 = jax.random.normal(kw2, (N2, K2), dtype=jnp.float32) * 0.02

    mlp2 = MLP(w2, None)
    y2 = jax.block_until_ready(mlp2(x2))
    y2_ref = x2 @ w2.T
    assert y2.shape == (M2, N2)
    assert jnp.allclose(y2, y2_ref, atol=5e-3, rtol=5e-3)

    print("KERNEL_OK")
</pallas_src>

<mosaic_0001>
module attributes {stable_mosaic.version = 11 : i64} {
  func.func @_kernel_full_k(%arg0: i32, %arg1: i32, %arg2: memref<16x256xf32, #tpu.memory_space<vmem>>, %arg3: memref<256x128xf32, #tpu.memory_space<vmem>>, %arg4: memref<1x128xf32, #tpu.memory_space<vmem>>, %arg5: memref<16x128xf32, #tpu.memory_space<vmem>>) attributes {dimension_semantics = [#tpu.dimension_semantics<parallel>, #tpu.dimension_semantics<parallel>], iteration_bounds = array<i64: 1, 1>, scalar_prefetch = 0 : i64, scratch_operands = 0 : i64, tpu.core_type = #tpu.core_type<tc>, window_params = [{transform_indices = @transform_0, window_bounds = array<i64: 16, 256>}, {transform_indices = @transform_1, window_bounds = array<i64: 256, 128>}, {transform_indices = @transform_2, window_bounds = array<i64: 1, 128>}, {transform_indices = @transform_3, window_bounds = array<i64: 16, 128>}]} {
    %c0 = arith.constant 0 : index
    %c0_0 = arith.constant 0 : index
    %0 = vector.load %arg2[%c0, %c0_0] : memref<16x256xf32, #tpu.memory_space<vmem>>, vector<16x256xf32>
    %c0_1 = arith.constant 0 : index
    %c0_2 = arith.constant 0 : index
    %1 = vector.load %arg3[%c0_1, %c0_2] : memref<256x128xf32, #tpu.memory_space<vmem>>, vector<256x128xf32>
    %cst = arith.constant dense<0.000000e+00> : vector<16x128xf32>
    %2 = tpu.matmul %0, %1, %cst {dimension_numbers = #tpu.dot_dimension_numbers<[1], [0], [0], [1], [0, 0, 1, 1], [], []>} : vector<16x256xf32>, vector<256x128xf32>, vector<16x128xf32> -> vector<16x128xf32>
    %c0_3 = arith.constant 0 : index
    %c0_4 = arith.constant 0 : index
    %3 = vector.load %arg4[%c0_3, %c0_4] : memref<1x128xf32, #tpu.memory_space<vmem>>, vector<1x128xf32>
    %4 = vector.broadcast %3 : vector<1x128xf32> to vector<16x128xf32>
    %5 = arith.addf %2, %4 : vector<16x128xf32>
    %c0_5 = arith.constant 0 : index
    %c0_6 = arith.constant 0 : index
    %6 = vector.load %arg5[%c0_5, %c0_6] : memref<16x128xf32, #tpu.memory_space<vmem>>, vector<16x128xf32>
    tpu.vector_store %arg5[%c0_5, %c0_6], %5 {strides = array<i32>} : memref<16x128xf32, #tpu.memory_space<vmem>>, vector<16x128xf32>,
    return
  }
  func.func @transform_0(%arg0: i32, %arg1: i32) -> (i32, i32) {
    %c0_i32 = arith.constant 0 : i32
    %c0_i32_0 = arith.constant 0 : i32
    return %arg0, %c0_i32 : i32, i32
  }
  func.func @transform_1(%arg0: i32, %arg1: i32) -> (i32, i32) {
    %c0_i32 = arith.constant 0 : i32
    %c0_i32_0 = arith.constant 0 : i32
    return %c0_i32, %arg1 : i32, i32
  }
  func.func @transform_2(%arg0: i32, %arg1: i32) -> (i32, i32) {
    %c0_i32 = arith.constant 0 : i32
    %c0_i32_0 = arith.constant 0 : i32
    return %c0_i32, %arg1 : i32, i32
  }
  func.func @transform_3(%arg0: i32, %arg1: i32) -> (i32, i32) {
    %c0_i32 = arith.constant 0 : i32
    return %arg0, %arg1 : i32, i32
  }
}

</mosaic_0001>

<llo_original>
// kernel: tpu_custom_call.1
$region0: #{tpu_custom_call.1}
  #allocation0 [shape = 'u32[]', space=smem, size = 0x4, offset = 0x4, fixed_abs, tag = 'smem constant byte address 0x4 - core index']
  #allocation1 [shape = 'u32[144,128]{1,0:T(1,128)}', space=vmem, size = 0x12000, scoped, tag = 'internal scratch']
  %s0 = inlined_call_operand.hbm [shape: f32[16,256], index: 0, kind: input, shape index: {}]
  %s1 = inlined_call_operand.hbm [shape: f32[256,128], index: 1, kind: input, shape index: {}]
  %s2 = inlined_call_operand.vmem [shape: f32[1,128], index: 2, kind: input, shape index: {}]
  %s3 = inlined_call_operand.hbm [shape: f32[16,128], index: 3, kind: output, shape index: {}]
  %s4 = sld [smem:[#allocation0]]
  $region30: #{tpu_custom_call.1} parent=0
    _
  %s6 = ssub.s32 1, %s4
  %s7 = scalar_select 0, %s6, %s4
  $region1: #{tpu_custom_call.1} parent=0
    #allocation2 [shape = 'u8[16384]{0}', space=vmem, size = 0x4000, scoped, tag = 'input window, operand 0, single buffered']
    #allocation3 [shape = 's32[1]{0}', space=sflag, size = 0x4, scoped, tag = 'scoped memory for tpu_custom_call.1']
    #allocation4 [shape = 's32[1]{0}', space=sflag, size = 0x4, scoped, tag = 'scoped memory for tpu_custom_call.1']
    #allocation5 [shape = 'u8[131072]{0}', space=vmem, size = 0x20000, scoped, tag = 'input window, operand 1, single buffered']
    #allocation6 [shape = 's32[1]{0}', space=sflag, size = 0x4, scoped, tag = 'scoped memory for tpu_custom_call.1']
    #allocation7 [shape = 'u8[8192]{0}', space=vmem, size = 0x2000, scoped, tag = 'output window, operand 0, single buffered']
    %8 = vsyncpa [#allocation3], 0
    %9 = vsyncpa [#allocation6], 0
    %10 = vsyncpa [#allocation4], 0
    // Predicated region
    $region2: #{tpu_custom_call.1} parent=1 // pred_check
      _
    $region3: #{tpu_custom_call.1} parent=1 // pred_check_branch
      %12 = sbr.rel (0) target = $region5
    $region4: #{tpu_custom_call.1} parent=1 // pred_region
      %s14 = ssub.s32 512, 512
      %15 = vsyncadd [#allocation3], %s14
      %s16 = sshll.u32 [#allocation2], 4
      %s17 = int_to_ptr.vmem [resolvable:$true] %s16
      %22 = dma.hbm_to_vmem [thread:$0]  %s0, 512, %s17, [#allocation3], 256, 256, 16
    $region5: #{tpu_custom_call.1} parent=1 // pred_fallthru
      _
    // Predicated region
    $region6: #{tpu_custom_call.1} parent=1 // pred_check
      _
    $region7: #{tpu_custom_call.1} parent=1 // pred_check_branch
      %24 = sbr.rel (0) target = $region9
    $region8: #{tpu_custom_call.1} parent=1 // pred_region
      %s26 = ssub.s32 4096, 4096
      %27 = vsyncadd [#allocation6], %s26
      %s28 = sshll.u32 [#allocation5], 4
      %s29 = int_to_ptr.vmem [resolvable:$true] %s28
      %34 = dma.hbm_to_vmem [thread:$0]  %s1, 4096, %s29, [#allocation6], 128, 128, 8
    $region9: #{tpu_custom_call.1} parent=1 // pred_fallthru
      _
    // Predicated region
    $region10: #{tpu_custom_call.1} parent=1 // pred_check
      _
    $region11: #{tpu_custom_call.1} parent=1 // pred_check_branch
      %36 = sbr.rel (0) target = $region13
    $region12: #{tpu_custom_call.1} parent=1 // pred_region
      _
    $region13: #{tpu_custom_call.1} parent=1 // pred_fallthru
      _
    // Predicated region
    $region14: #{tpu_custom_call.1} parent=1 // pred_check
      _
    $region15: #{tpu_custom_call.1} parent=1 // pred_check_branch
      %38 = sbr.rel (0) target = $region17
    $region16: #{tpu_custom_call.1} parent=1 // pred_region
      %39 = dma.done [#allocation3], 512
    $region17: #{tpu_custom_call.1} parent=1 // pred_fallthru
      _
    // Predicated region
    $region18: #{tpu_custom_call.1} parent=1 // pred_check
      _
    $region19: #{tpu_custom_call.1} parent=1 // pred_check_branch
      %41 = sbr.rel (0) target = $region21
    $region20: #{tpu_custom_call.1} parent=1 // pred_region
      %42 = dma.done [#allocation6], 4096
    $region21: #{tpu_custom_call.1} parent=1 // pred_fallthru
      _
    %v43 = vld [vmem:[#allocation2] sm:$0xff]
    %v44 = vld [vmem:[#allocation2 + $0x8] sm:$0xff]
    %v45 = vld [vmem:[#allocation2 + $0x10] sm:$0xff]
    %v46 = vld [vmem:[#allocation2 + $0x18] sm:$0xff]
    %v47 = vld [vmem:[#allocation5] sm:$0xff]
    %v48 = vld [vmem:[#allocation5 + $0x8] sm:$0xff]
    %v49 = vld [vmem:[#allocation5 + $0x10] sm:$0xff]
    %v50 = vld [vmem:[#allocation5 + $0x18] sm:$0xff]
    %v51 = vld [vmem:[#allocation5 + $0x20] sm:$0xff]
    %v52 = vld [vmem:[#allocation5 + $0x28] sm:$0xff]
    %v53 = vld [vmem:[#allocation5 + $0x30] sm:$0xff]
    %v54 = vld [vmem:[#allocation5 + $0x38] sm:$0xff]
    %v55 = vld [vmem:[#allocation5 + $0x40] sm:$0xff]
    %v56 = vld [vmem:[#allocation5 + $0x48] sm:$0xff]
    %v57 = vld [vmem:[#allocation5 + $0x50] sm:$0xff]
    %v58 = vld [vmem:[#allocation5 + $0x58] sm:$0xff]
    %v59 = vld [vmem:[#allocation5 + $0x60] sm:$0xff]
    %v60 = vld [vmem:[#allocation5 + $0x68] sm:$0xff]
    %v61 = vld [vmem:[#allocation5 + $0x70] sm:$0xff]
    %v62 = vld [vmem:[#allocation5 + $0x78] sm:$0xff]
    %v63 = vld [vmem:[#allocation5 + $0x80] sm:$0xff]
    %v64 = vld [vmem:[#allocation5 + $0x88] sm:$0xff]
    %v65 = vld [vmem:[#allocation5 + $0x90] sm:$0xff]
    %v66 = vld [vmem:[#allocation5 + $0x98] sm:$0xff]
    %v67 = vld [vmem:[#allocation5 + $0xa0] sm:$0xff]
    %v68 = vld [vmem:[#allocation5 + $0xa8] sm:$0xff]
    %v69 = vld [vmem:[#allocation5 + $0xb0] sm:$0xff]
    %v70 = vld [vmem:[#allocation5 + $0xb8] sm:$0xff]
    %v71 = vld [vmem:[#allocation5 + $0xc0] sm:$0xff]
    %v72 = vld [vmem:[#allocation5 + $0xc8] sm:$0xff]
    %v73 = vld [vmem:[#allocation5 + $0xd0] sm:$0xff]
    %v74 = vld [vmem:[#allocation5 + $0xd8] sm:$0xff]
    %v75 = vld [vmem:[#allocation5 + $0xe0] sm:$0xff]
    %v76 = vld [vmem:[#allocation5 + $0xe8] sm:$0xff]
    %v77 = vld [vmem:[#allocation5 + $0xf0] sm:$0xff]
    %v78 = vld [vmem:[#allocation5 + $0xf8] sm:$0xff]
    %v79 = vld [vmem:[%s2] sm:$0x1]
    %v81 = vlaneseq
    %v82 = vshrl.u32 %v81, 7
    %v83 = vsub.s32 0, %v82
    %v84 = vrot.slane %v79, %v83
    %86 = vmatprep.subr.mxu0 0.0
    %87 = vmatpush1.msra.mxu0 %v62
    %88 = vmatprep.subr.mxu0 0.0
    %89 = vmatpush1.msra.mxu0 %v61
    %90 = vmatprep.subr.mxu0 0.0
    %91 = vmatpush1.msra.mxu0 %v60
    %92 = vmatprep.subr.mxu0 0.0
    %93 = vmatpush1.msra.mxu0 %v59
    %94 = vmatprep.subr.mxu0 0.0
    %95 = vmatpush1.msra.mxu0 %v58
    %96 = vmatprep.subr.mxu0 0.0
    %97 = vmatpush1.msra.mxu0 %v57
    %98 = vmatprep.subr.mxu0 0.0
    %99 = vmatpush1.msra.mxu0 %v56
    %100 = vmatprep.subr.mxu0 0.0
    %101 = vmatpush1.msra.mxu0 %v55
    %102 = vmatprep.subr.mxu0 0.0
    %103 = vmatpush1.msra.mxu0 %v54
    %104 = vmatprep.subr.mxu0 0.0
    %105 = vmatpush1.msra.mxu0 %v53
    %106 = vmatprep.subr.mxu0 0.0
    %107 = vmatpush1.msra.mxu0 %v52
    %108 = vmatprep.subr.mxu0 0.0
    %109 = vmatpush1.msra.mxu0 %v51
    %110 = vmatprep.subr.mxu0 0.0
    %111 = vmatpush1.msra.mxu0 %v50
    %112 = vmatprep.subr.mxu0 0.0
    %113 = vmatpush1.msra.mxu0 %v49
    %114 = vmatprep.subr.mxu0 0.0
    %115 = vmatpush1.msra.mxu0 %v48
    %116 = vmatprep.subr.mxu0 0.0
    %117 = vmatpush1.msra.mxu0 %v47
    %118 = vmatprep.subr.mxu0 0.0
    %119 = vmatpush2.msra.mxu0 %v78
    %120 = vmatprep.subr.mxu0 0.0
    %121 = vmatpush2.msra.mxu0 %v77
    %122 = vmatprep.subr.mxu0 0.0
    %123 = vmatpush2.msra.mxu0 %v76
    %124 = vmatprep.subr.mxu0 0.0
    %125 = vmatpush2.msra.mxu0 %v75
    %126 = vmatprep.subr.mxu0 0.0
    %127 = vmatpush2.msra.mxu0 %v74
    %128 = vmatprep.subr.mxu0 0.0
    %129 = vmatpush2.msra.mxu0 %v73
    %130 = vmatprep.subr.mxu0 0.0
    %131 = vmatpush2.msra.mxu0 %v72
    %132 = vmatprep.subr.mxu0 0.0
    %133 = vmatpush2.msra.mxu0 %v71
    %134 = vmatprep.subr.mxu0 0.0
    %135 = vmatpush2.msra.mxu0 %v70
    %136 = vmatprep.subr.mxu0 0.0
    %137 = vmatpush2.msra.mxu0 %v69
    %138 = vmatprep.subr.mxu0 0.0
    %139 = vmatpush2.msra.mxu0 %v68
    %140 = vmatprep.subr.mxu0 0.0
    %141 = vmatpush2.msra.mxu0 %v67
    %142 = vmatprep.subr.mxu0 0.0
    %143 = vmatpush2.msra.mxu0 %v66
    %144 = vmatprep.subr.mxu0 0.0
    %145 = vmatpush2.msra.mxu0 %v65
    %146 = vmatprep.subr.mxu0 0.0
    %147 = vmatpush2.msra.mxu0 %v64
    %148 = vmatprep.subr.mxu0 0.0
    %149 = vmatpush2.msra.mxu0 %v63
    %150 = vmatprep.mubr.f32.mxu0 %v44
    %151 = vmatmul.mubr.f32.gmra.mxu0 %v43
    %v152 = vpop.f32.mrf.mxu0
    %v153 = vadd.f32 %v84, %v152
    %v154 = vpop.f32.mrf.mxu0
    %155 = vmatprep.mubr.f32.mxu0 %v46
    %156 = vmatmul.mubr.f32.gmra.mxu0 %v45
    %v157 = vpop.f32.mrf.mxu0
    %v158 = vadd.f32 %v84, %v157
    %v159 = vpop.f32.mrf.mxu0
    %160 = vdwg.mxu0
    %161 = vst [vmem:[#allocation7] sm:$0xff] %v153
    %162 = vst [vmem:[#allocation7 + $0x8] sm:$0xff] %v158
    // Predicated region
    $region22: #{tpu_custom_call.1} parent=1 // pred_check
      _
    $region23: #{tpu_custom_call.1} parent=1 // pred_check_branch
      %164 = sbr.rel (0) target = $region25
    $region24: #{tpu_custom_call.1} parent=1 // pred_region
      %s166 = ssub.s32 256, 256
      %167 = vsyncadd [#allocation4], %s166
      %s168 = sshll.u32 [#allocation7], 4
      %s169 = int_to_ptr.vmem [resolvable:$true] %s168
      %174 = dma.vmem_to_hbm [thread:$0]  %s169, 256, %s3, [#allocation4], 128, 128, 8
    $region25: #{tpu_custom_call.1} parent=1 // pred_fallthru
      _
    // Predicated region
    $region26: #{tpu_custom_call.1} parent=1 // pred_check
      _
    $region27: #{tpu_custom_call.1} parent=1 // pred_check_branch
      %176 = sbr.rel (0) target = $region29
    $region28: #{tpu_custom_call.1} parent=1 // pred_region
      %177 = dma.done [#allocation4], 256
    $region29: #{tpu_custom_call.1} parent=1 // pred_fallthru
      _
    %178 = vsyncpa [#allocation3], 1
    %179 = vsyncpa [#allocation6], 1
    %180 = vsyncpa [#allocation4], 1

</llo_original>
